<compile_context>
chip_gen: v7x
topology: tpu7x:2x2x1
jax: 0.10.0
libtpu: 0.0.40
codegen_flags: <defaults>
</compile_context>

<pallas_src>
import functools

import jax
import jax.numpy as jnp
from jax.experimental import pallas as pl
from jax.experimental.pallas import tpu as pltpu


def _location_kernel(x_ref, bounds_ref,
                     w1_ref, w2a_ref, w2b_ref, b2_ref,
                     w3_ref, b3_ref,
                     o_ref):
    # addr_proj: Linear(768 -> 128). bf16 cast happens here (in VMEM, hidden under
    # the x DMA) instead of as a standalone HBM-round-trip convert in the wrapper.
    # MXU runs bf16 natively; accumulation stays f32. b1 is folded into b2.
    xb = x_ref[...].astype(jnp.bfloat16)
    w1b = w1_ref[...].astype(jnp.bfloat16)
    h = jnp.dot(xb, w1b, preferred_element_type=jnp.float32)

    # Linear(147 -> 64) on concat([h, bounds], -1), done as a split matmul:
    #   concat(h, b) @ W2 == h @ W2[:128] + b @ W2[128:]
    g = (jnp.dot(h, w2a_ref[...], preferred_element_type=jnp.float32)
         + jnp.dot(bounds_ref[...], w2b_ref[...],
                   preferred_element_type=jnp.float32)
         + b2_ref[...])
    g = jnp.maximum(g, 0.0)  # ReLU

    # Linear(64 -> 32) + ReLU
    out = jnp.dot(g, w3_ref[...], preferred_element_type=jnp.float32) + b3_ref[...]
    o_ref[...] = jnp.maximum(out, 0.0).astype(o_ref.dtype)


def _round_up(x, m):
    return ((x + m - 1) // m) * m


@functools.partial(jax.jit, static_argnames=("tm",))
def location_model_pallas(loc_bert_emb, bounds, params, tm=2048):
    """loc_bert_emb: (B, S, 768) f32 or bf16; bounds: (B, S, 19) -> (B, S, 32) f32."""
    w1, b1, w2a, w2b, b2, w3, b3 = params
    B, S, D_in = loc_bert_emb.shape
    D_b = bounds.shape[-1]
    D_hid = w1.shape[1]       # 128
    D_mid = w2a.shape[1]      # 64
    D_out = w3.shape[1]       # 32
    N = B * S

    # Row tile:
    #  * 16-aligned (bf16 sublane pack); tiny N -> tile is just the aligned cover.
    #  * capped at ceil(N/2) so the grid has >= 2 steps whenever N spans two aligned
    #    blocks, keeping both v7x TensorCores busy under "parallel" semantics.
    row_align = 16
    tm_eff = max(row_align, min(tm, _round_up(pl.cdiv(N, 2), row_align)))
    grid = (pl.cdiv(N, tm_eff),)   # ragged last block: padded reads, masked writes

    # No standalone converts of x in the wrapper (would add a full HBM pass over the
    # dominant tensor). Reshape is metadata-only.
    x = loc_bert_emb.reshape(N, D_in)
    bd = bounds.reshape(N, D_b).astype(jnp.float32)   # mirrors .type(torch.float32)

    # Fold b1 into b2:  (x@W1 + b1)@W2a + b@W2b + b2 == x@W1@W2a + b@W2b + (b2 + b1@W2a)
    b2_eff = b2 + jnp.dot(b1, w2a)

    full = lambda shape: pl.BlockSpec(shape, lambda i: (0, 0))

    flops = 2 * N * (D_in * D_hid + (D_hid + D_b) * D_mid + D_mid * D_out)
    bytes_accessed = (N * D_in * x.dtype.itemsize        # activations (dominant)
                      + N * D_b * 4                      # bounds
                      + N * D_out * 4                    # output
                      + D_in * D_hid * w1.dtype.itemsize
                      + (D_hid + D_b) * D_mid * 4
                      + D_mid * D_out * 4
                      + (D_mid + D_out) * 4)

    out = pl.pallas_call(
        _location_kernel,
        out_shape=jax.ShapeDtypeStruct((N, D_out), jnp.float32),
        grid_spec=pltpu.PrefetchScalarGridSpec(
            num_scalar_prefetch=0,
            grid=grid,
            in_specs=[
                pl.BlockSpec((tm_eff, D_in), lambda i: (i, 0)),   # x rows
                pl.BlockSpec((tm_eff, D_b), lambda i: (i, 0)),    # bounds rows
                full((D_in, D_hid)),                              # w1 (768,128)
                full((D_hid, D_mid)),                             # w2a (128,64)
                full((D_b, D_mid)),                               # w2b (19,64)
                full((1, D_mid)),                                 # b2_eff
                full((D_mid, D_out)),                             # w3 (64,32)
                full((1, D_out)),                                 # b3
            ],
            out_specs=pl.BlockSpec((tm_eff, D_out), lambda i: (i, 0)),
        ),
        compiler_params=pltpu.CompilerParams(
            dimension_semantics=("parallel",),
            # Double-buffered f32 x block at tm=2048 is ~12 MiB; total use ~24 MiB.
            # Raise past v5e(16 MiB)/v6e-v7x(32 MiB) scoped defaults; safe vs v7x's
            # 64 MiB physical VMEM.
            vmem_limit_bytes=48 * 1024 * 1024),
        cost_estimate=pl.CostEstimate(flops=flops, transcendentals=0,
                                      bytes_accessed=bytes_accessed),
    )(x, bd, w1, w2a, w2b, b2_eff, w3, b3)

    return out.reshape(B, S, D_out)


def init_params(key, latlng_feat_size=19, location_dim=32):
    """Deterministic init mimicking torch.nn.Linear default (uniform +-1/sqrt(fan_in)).
    Weights stored transposed: (in_features, out_features)."""
    ks = jax.random.split(key, 6)

    def lin(kw, kb, fan_in, fan_out):
        bound = 1.0 / jnp.sqrt(fan_in)
        w = jax.random.uniform(kw, (fan_in, fan_out), jnp.float32, -bound, bound)
        b = jax.random.uniform(kb, (1, fan_out), jnp.float32, -bound, bound)
        return w, b

    w1, b1 = lin(ks[0], ks[1], 768, 128)                            # addr_proj
    d_hid = w1.shape[1]                                             # derive the split
    w2_full, b2 = lin(ks[2], ks[3], d_hid + latlng_feat_size, 64)   # Linear(147, 64)
    w3, b3 = lin(ks[4], ks[5], 64, location_dim)                    # Linear(64, 32)

    w2a = w2_full[:d_hid, :]   # multiplies the projected embedding
    w2b = w2_full[d_hid:, :]   # multiplies bounds
    return (w1, b1, w2a, w2b, b2, w3, b3), w2_full


def reference_jax(loc_bert_emb, bounds, params, w2_full):
    """Pure-JAX f32 reference matching the PyTorch forward exactly."""
    w1, b1, _, _, b2, w3, b3 = params
    proj = loc_bert_emb.astype(jnp.float32) @ w1 + b1
    geo = jnp.concatenate([proj, bounds.astype(jnp.float32)], axis=2)
    h = jnp.maximum(geo @ w2_full + b2, 0.0)
    return jnp.maximum(h @ w3 + b3, 0.0)


if __name__ == "__main__":
    key = jax.random.PRNGKey(0)
    k_p, k_in1, k_bd1, k_in2, k_bd2 = jax.random.split(key, 5)

    params, w2_full = init_params(k_p)

    # Case 1: module-spec small shapes (B=2, S=8) -> single grid step.
    B, S = 2, 8
    emb = jax.random.normal(k_in1, (B, S, 768), jnp.float32)
    bounds = jax.random.normal(k_bd1, (B, S, 19), jnp.float32)
    out = jax.block_until_ready(location_model_pallas(emb, bounds, params))
    ref = reference_jax(emb, bounds, params, w2_full)
    assert out.shape == (B, S, 32), out.shape
    # bf16 first matmul vs pure-f32 reference -> loosened tolerance.
    assert jnp.allclose(out, ref, atol=5e-2, rtol=5e-2), \
        float(jnp.max(jnp.abs(out - ref)))

    # Case 2: multi-step grid with a ragged last block (N=600 rows at tm=128 ->
    # grid=(5,), last block has 88/128 valid rows), exercising the masked-write
    # path and the >=2-step megacore split.
    B2, S2 = 2, 300
    emb2 = jax.random.normal(k_in2, (B2, S2, 768), jnp.float32)
    bounds2 = jax.random.normal(k_bd2, (B2, S2, 19), jnp.float32)
    out2 = jax.block_until_ready(
        location_model_pallas(emb2, bounds2, params, tm=128))
    ref2 = reference_jax(emb2, bounds2, params, w2_full)
    assert out2.shape == (B2, S2, 32), out2.shape
    assert jnp.allclose(out2, ref2, atol=5e-2, rtol=5e-2), \
        float(jnp.max(jnp.abs(out2 - ref2)))

    print("KERNEL_OK")
</pallas_src>

<mosaic_0001>
module attributes {stable_mosaic.version = 11 : i64} {
  func.func @_location_kernel(%arg0: i32, %arg1: memref<16x768xf32, #tpu.memory_space<vmem>>, %arg2: memref<16x19xf32, #tpu.memory_space<vmem>>, %arg3: memref<768x128xf32, #tpu.memory_space<vmem>>, %arg4: memref<128x64xf32, #tpu.memory_space<vmem>>, %arg5: memref<19x64xf32, #tpu.memory_space<vmem>>, %arg6: memref<1x64xf32, #tpu.memory_space<vmem>>, %arg7: memref<64x32xf32, #tpu.memory_space<vmem>>, %arg8: memref<1x32xf32, #tpu.memory_space<vmem>>, %arg9: memref<16x32xf32, #tpu.memory_space<vmem>>) attributes {dimension_semantics = [#tpu.dimension_semantics<parallel>], iteration_bounds = array<i64: 1>, scalar_prefetch = 0 : i64, scratch_operands = 0 : i64, tpu.core_type = #tpu.core_type<tc>, window_params = [{transform_indices = @transform_0, window_bounds = array<i64: 16, 768>}, {transform_indices = @transform_1, window_bounds = array<i64: 16, 19>}, {pipeline_mode = #tpu.pipeline_mode<synchronous>, transform_indices = @transform_2, window_bounds = array<i64: 768, 128>}, {pipeline_mode = #tpu.pipeline_mode<synchronous>, transform_indices = @transform_3, window_bounds = array<i64: 128, 64>}, {pipeline_mode = #tpu.pipeline_mode<synchronous>, transform_indices = @transform_4, window_bounds = array<i64: 19, 64>}, {pipeline_mode = #tpu.pipeline_mode<synchronous>, transform_indices = @transform_5, window_bounds = array<i64: 1, 64>}, {pipeline_mode = #tpu.pipeline_mode<synchronous>, transform_indices = @transform_6, window_bounds = array<i64: 64, 32>}, {pipeline_mode = #tpu.pipeline_mode<synchronous>, transform_indices = @transform_7, window_bounds = array<i64: 1, 32>}, {transform_indices = @transform_8, window_bounds = array<i64: 16, 32>}]} {
    %c0 = arith.constant 0 : index
    %c0_0 = arith.constant 0 : index
    %0 = vector.load %arg1[%c0, %c0_0] : memref<16x768xf32, #tpu.memory_space<vmem>>, vector<16x768xf32>
    %1 = arith.truncf %0 : vector<16x768xf32> to vector<16x768xbf16>
    %c0_1 = arith.constant 0 : index
    %c0_2 = arith.constant 0 : index
    %2 = vector.load %arg3[%c0_1, %c0_2] : memref<768x128xf32, #tpu.memory_space<vmem>>, vector<768x128xf32>
    %3 = arith.truncf %2 : vector<768x128xf32> to vector<768x128xbf16>
    %cst = arith.constant dense<0.000000e+00> : vector<16x128xf32>
    %4 = tpu.matmul %1, %3, %cst {dimension_numbers = #tpu.dot_dimension_numbers<[1], [0], [0], [1], [0, 0, 1, 1], [], []>} : vector<16x768xbf16>, vector<768x128xbf16>, vector<16x128xf32> -> vector<16x128xf32>
    %c0_3 = arith.constant 0 : index
    %c0_4 = arith.constant 0 : index
    %5 = vector.load %arg4[%c0_3, %c0_4] : memref<128x64xf32, #tpu.memory_space<vmem>>, vector<128x64xf32>
    %cst_5 = arith.constant dense<0.000000e+00> : vector<16x64xf32>
    %6 = tpu.matmul %4, %5, %cst_5 {dimension_numbers = #tpu.dot_dimension_numbers<[1], [0], [0], [1], [0, 0, 1, 1], [], []>} : vector<16x128xf32>, vector<128x64xf32>, vector<16x64xf32> -> vector<16x64xf32>
    %c0_6 = arith.constant 0 : index
    %c0_7 = arith.constant 0 : index
    %7 = vector.load %arg2[%c0_6, %c0_7] : memref<16x19xf32, #tpu.memory_space<vmem>>, vector<16x19xf32>
    %c0_8 = arith.constant 0 : index
    %c0_9 = arith.constant 0 : index
    %8 = vector.load %arg5[%c0_8, %c0_9] : memref<19x64xf32, #tpu.memory_space<vmem>>, vector<19x64xf32>
    %cst_10 = arith.constant dense<0.000000e+00> : vector<16x64xf32>
    %9 = tpu.matmul %7, %8, %cst_10 {dimension_numbers = #tpu.dot_dimension_numbers<[1], [0], [0], [1], [0, 0, 1, 1], [], []>} : vector<16x19xf32>, vector<19x64xf32>, vector<16x64xf32> -> vector<16x64xf32>
    %10 = arith.addf %6, %9 : vector<16x64xf32>
    %c0_11 = arith.constant 0 : index
    %c0_12 = arith.constant 0 : index
    %11 = vector.load %arg6[%c0_11, %c0_12] : memref<1x64xf32, #tpu.memory_space<vmem>>, vector<1x64xf32>
    %12 = vector.broadcast %11 : vector<1x64xf32> to vector<16x64xf32>
    %13 = arith.addf %10, %12 : vector<16x64xf32>
    %cst_13 = arith.constant 0.000000e+00 : f32
    %14 = vector.broadcast %cst_13 : f32 to vector<16x64xf32>
    %15 = arith.maximumf %13, %14 : vector<16x64xf32>
    %c0_14 = arith.constant 0 : index
    %c0_15 = arith.constant 0 : index
    %16 = vector.load %arg7[%c0_14, %c0_15] : memref<64x32xf32, #tpu.memory_space<vmem>>, vector<64x32xf32>
    %cst_16 = arith.constant dense<0.000000e+00> : vector<16x32xf32>
    %17 = tpu.matmul %15, %16, %cst_16 {dimension_numbers = #tpu.dot_dimension_numbers<[1], [0], [0], [1], [0, 0, 1, 1], [], []>} : vector<16x64xf32>, vector<64x32xf32>, vector<16x32xf32> -> vector<16x32xf32>
    %c0_17 = arith.constant 0 : index
    %c0_18 = arith.constant 0 : index
    %18 = vector.load %arg8[%c0_17, %c0_18] : memref<1x32xf32, #tpu.memory_space<vmem>>, vector<1x32xf32>
    %19 = vector.broadcast %18 : vector<1x32xf32> to vector<16x32xf32>
    %20 = arith.addf %17, %19 : vector<16x32xf32>
    %cst_19 = arith.constant 0.000000e+00 : f32
    %21 = vector.broadcast %cst_19 : f32 to vector<16x32xf32>
    %22 = arith.maximumf %20, %21 : vector<16x32xf32>
    %c0_20 = arith.constant 0 : index
    %c0_21 = arith.constant 0 : index
    %23 = vector.load %arg9[%c0_20, %c0_21] : memref<16x32xf32, #tpu.memory_space<vmem>>, vector<16x32xf32>
    tpu.vector_store %arg9[%c0_20, %c0_21], %22 {strides = array<i32>} : memref<16x32xf32, #tpu.memory_space<vmem>>, vector<16x32xf32>,
    return
  }
  func.func @transform_0(%arg0: i32) -> (i32, i32) {
    %c0_i32 = arith.constant 0 : i32
    %c0_i32_0 = arith.constant 0 : i32
    return %arg0, %c0_i32 : i32, i32
  }
  func.func @transform_1(%arg0: i32) -> (i32, i32) {
    %c0_i32 = arith.constant 0 : i32
    %c0_i32_0 = arith.constant 0 : i32
    return %arg0, %c0_i32 : i32, i32
  }
  func.func @transform_2(%arg0: i32) -> (i32, i32) {
    %c0_i32 = arith.constant 0 : i32
    %c0_i32_0 = arith.constant 0 : i32
    %c0_i32_1 = arith.constant 0 : i32
    return %c0_i32, %c0_i32_0 : i32, i32
  }
  func.func @transform_3(%arg0: i32) -> (i32, i32) {
    %c0_i32 = arith.constant 0 : i32
    %c0_i32_0 = arith.constant 0 : i32
    %c0_i32_1 = arith.constant 0 : i32
    return %c0_i32, %c0_i32_0 : i32, i32
  }
  func.func @transform_4(%arg0: i32) -> (i32, i32) {
    %c0_i32 = arith.constant 0 : i32
    %c0_i32_0 = arith.constant 0 : i32
    %c0_i32_1 = arith.constant 0 : i32
    return %c0_i32, %c0_i32_0 : i32, i32
  }
  func.func @transform_5(%arg0: i32) -> (i32, i32) {
    %c0_i32 = arith.constant 0 : i32
    %c0_i32_0 = arith.constant 0 : i32
    %c0_i32_1 = arith.constant 0 : i32
    return %c0_i32, %c0_i32_0 : i32, i32
  }
  func.func @transform_6(%arg0: i32) -> (i32, i32) {
    %c0_i32 = arith.constant 0 : i32
    %c0_i32_0 = arith.constant 0 : i32
    %c0_i32_1 = arith.constant 0 : i32
    return %c0_i32, %c0_i32_0 : i32, i32
  }
  func.func @transform_7(%arg0: i32) -> (i32, i32) {
    %c0_i32 = arith.constant 0 : i32
    %c0_i32_0 = arith.constant 0 : i32
    %c0_i32_1 = arith.constant 0 : i32
    return %c0_i32, %c0_i32_0 : i32, i32
  }
  func.func @transform_8(%arg0: i32) -> (i32, i32) {
    %c0_i32 = arith.constant 0 : i32
    %c0_i32_0 = arith.constant 0 : i32
    return %arg0, %c0_i32 : i32, i32
  }
}

</mosaic_0001>

<llo_original>
// kernel: location_model_pallas.1
$region0: #{location_model_pallas.1}
  #allocation0 [shape = 'u32[]', space=smem, size = 0x4, offset = 0x4, fixed_abs, tag = 'smem constant byte address 0x4 - core index']
  #allocation1 [shape = 'u32[144,128]{1,0:T(1,128)}', space=vmem, size = 0x12000, scoped, tag = 'internal scratch']
  %s0 = inlined_call_operand.vmem [shape: f32[16,768], index: 0, kind: input, shape index: {}]
  %s1 = inlined_call_operand.vmem [shape: f32[16,19], index: 1, kind: input, shape index: {}]
  %s2 = inlined_call_operand.hbm [shape: f32[768,128], index: 2, kind: input, shape index: {}]
  %s3 = inlined_call_operand.vmem [shape: f32[128,64], index: 3, kind: input, shape index: {}]
  %s4 = inlined_call_operand.vmem [shape: f32[19,64], index: 4, kind: input, shape index: {}]
  %s5 = inlined_call_operand.vmem [shape: f32[1,64], index: 5, kind: input, shape index: {}]
  %s6 = inlined_call_operand.vmem [shape: f32[64,32], index: 6, kind: input, shape index: {}]
  %s7 = inlined_call_operand.vmem [shape: f32[1,32], index: 7, kind: input, shape index: {}]
  %s8 = inlined_call_operand.hbm [shape: f32[16,32], index: 8, kind: output, shape index: {}]
  %s9 = sld [smem:[#allocation0]]
  $region46: #{location_model_pallas.1} parent=0
    _
  %s11 = ssub.s32 1, %s9
  %s12 = scalar_select 0, %s11, %s9
  $region1: #{location_model_pallas.1} parent=0
    #allocation2 [shape = 'u8[393216]{0}', space=vmem, size = 0x60000, scoped, tag = 'input window, operand 2, single buffered']
    #allocation3 [shape = 's32[1]{0}', space=sflag, size = 0x4, scoped, tag = 'scoped memory for location_model_pallas.1']
    #allocation4 [shape = 's32[1]{0}', space=sflag, size = 0x4, scoped, tag = 'scoped memory for location_model_pallas.1']
    #allocation5 [shape = 'u8[8192]{0}', space=vmem, size = 0x2000, scoped, tag = 'output window, operand 0, single buffered']
    %13 = vsyncpa [#allocation3], 0
    %14 = vsyncpa [#allocation4], 0
    // Predicated region
    $region2: #{location_model_pallas.1} parent=1 // pred_check
      _
    $region3: #{location_model_pallas.1} parent=1 // pred_check_branch
      %16 = sbr.rel (0) target = $region5
    $region4: #{location_model_pallas.1} parent=1 // pred_region
      _
    $region5: #{location_model_pallas.1} parent=1 // pred_fallthru
      _
    // Predicated region
    $region6: #{location_model_pallas.1} parent=1 // pred_check
      _
    $region7: #{location_model_pallas.1} parent=1 // pred_check_branch
      %18 = sbr.rel (0) target = $region9
    $region8: #{location_model_pallas.1} parent=1 // pred_region
      _
    $region9: #{location_model_pallas.1} parent=1 // pred_fallthru
      _
    // Predicated region
    $region10: #{location_model_pallas.1} parent=1 // pred_check
      _
    $region11: #{location_model_pallas.1} parent=1 // pred_check_branch
      %20 = sbr.rel (0) target = $region13
    $region12: #{location_model_pallas.1} parent=1 // pred_region
      %s22 = ssub.s32 12288, 12288
      %23 = vsyncadd [#allocation3], %s22
      %s24 = sshll.u32 [#allocation2], 4
      %s25 = int_to_ptr.vmem [resolvable:$true] %s24
      %30 = dma.hbm_to_vmem [thread:$0]  %s2, 12288, %s25, [#allocation3], 128, 128, 8
    $region13: #{location_model_pallas.1} parent=1 // pred_fallthru
      _
    // Predicated region
    $region14: #{location_model_pallas.1} parent=1 // pred_check
      _
    $region15: #{location_model_pallas.1} parent=1 // pred_check_branch
      %32 = sbr.rel (0) target = $region17
    $region16: #{location_model_pallas.1} parent=1 // pred_region
      _
    $region17: #{location_model_pallas.1} parent=1 // pred_fallthru
      _
    // Predicated region
    $region18: #{location_model_pallas.1} parent=1 // pred_check
      _
    $region19: #{location_model_pallas.1} parent=1 // pred_check_branch
      %34 = sbr.rel (0) target = $region21
    $region20: #{location_model_pallas.1} parent=1 // pred_region
      _
    $region21: #{location_model_pallas.1} parent=1 // pred_fallthru
      _
    // Predicated region
    $region22: #{location_model_pallas.1} parent=1 // pred_check
      _
    $region23: #{location_model_pallas.1} parent=1 // pred_check_branch
      %36 = sbr.rel (0) target = $region25
    $region24: #{location_model_pallas.1} parent=1 // pred_region
      _
    $region25: #{location_model_pallas.1} parent=1 // pred_fallthru
      _
    // Predicated region
    $region26: #{location_model_pallas.1} parent=1 // pred_check
      _
    $region27: #{location_model_pallas.1} parent=1 // pred_check_branch
      %38 = sbr.rel (0) target = $region29
    $region28: #{location_model_pallas.1} parent=1 // pred_region
      _
    $region29: #{location_model_pallas.1} parent=1 // pred_fallthru
      _
    // Predicated region
    $region30: #{location_model_pallas.1} parent=1 // pred_check
      _
    $region31: #{location_model_pallas.1} parent=1 // pred_check_branch
      %40 = sbr.rel (0) target = $region33
    $region32: #{location_model_pallas.1} parent=1 // pred_region
      _
    $region33: #{location_model_pallas.1} parent=1 // pred_fallthru
      _
    // Predicated region
    $region34: #{location_model_pallas.1} parent=1 // pred_check
      _
    $region35: #{location_model_pallas.1} parent=1 // pred_check_branch
      %42 = sbr.rel (0) target = $region37
    $region36: #{location_model_pallas.1} parent=1 // pred_region
      %43 = dma.done [#allocation3], 12288
    $region37: #{location_model_pallas.1} parent=1 // pred_fallthru
      _
    %v45 = vld [vmem:[%s0] sm:$0xff]
    %v46 = vld [vmem:[%s0 + $0x8] sm:$0xff]
    %v47 = vld [vmem:[%s0 + $0x10] sm:$0xff]
    %v48 = vld [vmem:[%s0 + $0x18] sm:$0xff]
    %v49 = vld [vmem:[%s0 + $0x20] sm:$0xff]
    %v50 = vld [vmem:[%s0 + $0x28] sm:$0xff]
    %v51 = vld [vmem:[%s0 + $0x30] sm:$0xff]
    %v52 = vld [vmem:[%s0 + $0x38] sm:$0xff]
    %v53 = vld [vmem:[%s0 + $0x40] sm:$0xff]
    %v54 = vld [vmem:[%s0 + $0x48] sm:$0xff]
    %v55 = vld [vmem:[%s0 + $0x50] sm:$0xff]
    %v56 = vld [vmem:[%s0 + $0x58] sm:$0xff]
    %v57 = vpack.c.bf16 %v51, %v45
    %v58 = vpack.c.bf16 %v52, %v46
    %v59 = vpack.c.bf16 %v53, %v47
    %v60 = vpack.c.bf16 %v54, %v48
    %v61 = vpack.c.bf16 %v55, %v49
    %v62 = vpack.c.bf16 %v56, %v50
    %v63 = vld [vmem:[#allocation2] sm:$0xff]
    %v64 = vld [vmem:[#allocation2 + $0x8] sm:$0xff]
    %v65 = vld [vmem:[#allocation2 + $0x10] sm:$0xff]
    %v66 = vld [vmem:[#allocation2 + $0x18] sm:$0xff]
    %v67 = vld [vmem:[#allocation2 + $0x20] sm:$0xff]
    %v68 = vld [vmem:[#allocation2 + $0x28] sm:$0xff]
    %v69 = vld [vmem:[#allocation2 + $0x30] sm:$0xff]
    %v70 = vld [vmem:[#allocation2 + $0x38] sm:$0xff]
    %v71 = vld [vmem:[#allocation2 + $0x40] sm:$0xff]
    %v72 = vld [vmem:[#allocation2 + $0x48] sm:$0xff]
    %v73 = vld [vmem:[#allocation2 + $0x50] sm:$0xff]
    %v74 = vld [vmem:[#allocation2 + $0x58] sm:$0xff]
    %v75 = vld [vmem:[#allocation2 + $0x60] sm:$0xff]
    %v76 = vld [vmem:[#allocation2 + $0x68] sm:$0xff]
    %v77 = vld [vmem:[#allocation2 + $0x70] sm:$0xff]
    %v78 = vld [vmem:[#allocation2 + $0x78] sm:$0xff]
    %v79 = vld [vmem:[#allocation2 + $0x80] sm:$0xff]
    %v80 = vld [vmem:[#allocation2 + $0x88] sm:$0xff]
    %v81 = vld [vmem:[#allocation2 + $0x90] sm:$0xff]
    %v82 = vld [vmem:[#allocation2 + $0x98] sm:$0xff]
    %v83 = vld [vmem:[#allocation2 + $0xa0] sm:$0xff]
    %v84 = vld [vmem:[#allocation2 + $0xa8] sm:$0xff]
    %v85 = vld [vmem:[#allocation2 + $0xb0] sm:$0xff]
    %v86 = vld [vmem:[#allocation2 + $0xb8] sm:$0xff]
    %v87 = vld [vmem:[#allocation2 + $0xc0] sm:$0xff]
    %v88 = vld [vmem:[#allocation2 + $0xc8] sm:$0xff]
    %v89 = vld [vmem:[#allocation2 + $0xd0] sm:$0xff]
    %v90 = vld [vmem:[#allocation2 + $0xd8] sm:$0xff]
    %v91 = vld [vmem:[#allocation2 + $0xe0] sm:$0xff]
    %v92 = vld [vmem:[#allocation2 + $0xe8] sm:$0xff]
    %v93 = vld [vmem:[#allocation2 + $0xf0] sm:$0xff]
    %v94 = vld [vmem:[#allocation2 + $0xf8] sm:$0xff]
    %v95 = vld [vmem:[#allocation2 + $0x100] sm:$0xff]
    %v96 = vld [vmem:[#allocation2 + $0x108] sm:$0xff]
    %v97 = vld [vmem:[#allocation2 + $0x110] sm:$0xff]
    %v98 = vld [vmem:[#allocation2 + $0x118] sm:$0xff]
    %v99 = vld [vmem:[#allocation2 + $0x120] sm:$0xff]
    %v100 = vld [vmem:[#allocation2 + $0x128] sm:$0xff]
    %v101 = vld [vmem:[#allocation2 + $0x130] sm:$0xff]
    %v102 = vld [vmem:[#allocation2 + $0x138] sm:$0xff]
    %v103 = vld [vmem:[#allocation2 + $0x140] sm:$0xff]
    %v104 = vld [vmem:[#allocation2 + $0x148] sm:$0xff]
    %v105 = vld [vmem:[#allocation2 + $0x150] sm:$0xff]
    %v106 = vld [vmem:[#allocation2 + $0x158] sm:$0xff]
    %v107 = vld [vmem:[#allocation2 + $0x160] sm:$0xff]
    %v108 = vld [vmem:[#allocation2 + $0x168] sm:$0xff]
    %v109 = vld [vmem:[#allocation2 + $0x170] sm:$0xff]
    %v110 = vld [vmem:[#allocation2 + $0x178] sm:$0xff]
    %v111 = vld [vmem:[#allocation2 + $0x180] sm:$0xff]
    %v112 = vld [vmem:[#allocation2 + $0x188] sm:$0xff]
    %v113 = vld [vmem:[#allocation2 + $0x190] sm:$0xff]
    %v114 = vld [vmem:[#allocation2 + $0x198] sm:$0xff]
    %v115 = vld [vmem:[#allocation2 + $0x1a0] sm:$0xff]
    %v116 = vld [vmem:[#allocation2 + $0x1a8] sm:$0xff]
    %v117 = vld [vmem:[#allocation2 + $0x1b0] sm:$0xff]
    %v118 = vld [vmem:[#allocation2 + $0x1b8] sm:$0xff]
    %v119 = vld [vmem:[#allocation2 + $0x1c0] sm:$0xff]
    %v120 = vld [vmem:[#allocation2 + $0x1c8] sm:$0xff]
    %v121 = vld [vmem:[#allocation2 + $0x1d0] sm:$0xff]
    %v122 = vld [vmem:[#allocation2 + $0x1d8] sm:$0xff]
    %v123 = vld [vmem:[#allocation2 + $0x1e0] sm:$0xff]
    %v124 = vld [vmem:[#allocation2 + $0x1e8] sm:$0xff]
    %v125 = vld [vmem:[#allocation2 + $0x1f0] sm:$0xff]
    %v126 = vld [vmem:[#allocation2 + $0x1f8] sm:$0xff]
    %v127 = vld [vmem:[#allocation2 + $0x200] sm:$0xff]
    %v128 = vld [vmem:[#allocation2 + $0x208] sm:$0xff]
    %v129 = vld [vmem:[#allocation2 + $0x210] sm:$0xff]
    %v130 = vld [vmem:[#allocation2 + $0x218] sm:$0xff]
    %v131 = vld [vmem:[#allocation2 + $0x220] sm:$0xff]
    %v132 = vld [vmem:[#allocation2 + $0x228] sm:$0xff]
    %v133 = vld [vmem:[#allocation2 + $0x230] sm:$0xff]
    %v134 = vld [vmem:[#allocation2 + $0x238] sm:$0xff]
    %v135 = vld [vmem:[#allocation2 + $0x240] sm:$0xff]
    %v136 = vld [vmem:[#allocation2 + $0x248] sm:$0xff]
    %v137 = vld [vmem:[#allocation2 + $0x250] sm:$0xff]
    %v138 = vld [vmem:[#allocation2 + $0x258] sm:$0xff]
    %v139 = vld [vmem:[#allocation2 + $0x260] sm:$0xff]
    %v140 = vld [vmem:[#allocation2 + $0x268] sm:$0xff]
    %v141 = vld [vmem:[#allocation2 + $0x270] sm:$0xff]
    %v142 = vld [vmem:[#allocation2 + $0x278] sm:$0xff]
    %v143 = vld [vmem:[#allocation2 + $0x280] sm:$0xff]
    %v144 = vld [vmem:[#allocation2 + $0x288] sm:$0xff]
    %v145 = vld [vmem:[#allocation2 + $0x290] sm:$0xff]
    %v146 = vld [vmem:[#allocation2 + $0x298] sm:$0xff]
    %v147 = vld [vmem:[#allocation2 + $0x2a0] sm:$0xff]
    %v148 = vld [vmem:[#allocation2 + $0x2a8] sm:$0xff]
    %v149 = vld [vmem:[#allocation2 + $0x2b0] sm:$0xff]
    %v150 = vld [vmem:[#allocation2 + $0x2b8] sm:$0xff]
    %v151 = vld [vmem:[#allocation2 + $0x2c0] sm:$0xff]
    %v152 = vld [vmem:[#allocation2 + $0x2c8] sm:$0xff]
    %v153 = vld [vmem:[#allocation2 + $0x2d0] sm:$0xff]
    %v154 = vld [vmem:[#allocation2 + $0x2d8] sm:$0xff]
    %v155 = vld [vmem:[#allocation2 + $0x2e0] sm:$0xff]
    %v156 = vld [vmem:[#allocation2 + $0x2e8] sm:$0xff]
    %v157 = vld [vmem:[#allocation2 + $0x2f0] sm:$0xff]
    %v158 = vld [vmem:[#allocation2 + $0x2f8] sm:$0xff]
    %v159 = vpack.c.bf16 %v64, %v63
    %v160 = vpack.c.bf16 %v66, %v65
    %v161 = vpack.c.bf16 %v68, %v67
    %v162 = vpack.c.bf16 %v70, %v69
    %v163 = vpack.c.bf16 %v72, %v71
    %v164 = vpack.c.bf16 %v74, %v73
    %v165 = vpack.c.bf16 %v76, %v75
    %v166 = vpack.c.bf16 %v78, %v77
    %v167 = vpack.c.bf16 %v80, %v79
    %v168 = vpack.c.bf16 %v82, %v81
    %v169 = vpack.c.bf16 %v84, %v83
    %v170 = vpack.c.bf16 %v86, %v85
    %v171 = vpack.c.bf16 %v88, %v87
    %v172 = vpack.c.bf16 %v90, %v89
    %v173 = vpack.c.bf16 %v92, %v91
    %v174 = vpack.c.bf16 %v94, %v93
    %v175 = vpack.c.bf16 %v96, %v95
    %v176 = vpack.c.bf16 %v98, %v97
    %v177 = vpack.c.bf16 %v100, %v99
    %v178 = vpack.c.bf16 %v102, %v101
    %v179 = vpack.c.bf16 %v104, %v103
    %v180 = vpack.c.bf16 %v106, %v105
    %v181 = vpack.c.bf16 %v108, %v107
    %v182 = vpack.c.bf16 %v110, %v109
    %v183 = vpack.c.bf16 %v112, %v111
    %v184 = vpack.c.bf16 %v114, %v113
    %v185 = vpack.c.bf16 %v116, %v115
    %v186 = vpack.c.bf16 %v118, %v117
    %v187 = vpack.c.bf16 %v120, %v119
    %v188 = vpack.c.bf16 %v122, %v121
    %v189 = vpack.c.bf16 %v124, %v123
    %v190 = vpack.c.bf16 %v126, %v125
    %v191 = vpack.c.bf16 %v128, %v127
    %v192 = vpack.c.bf16 %v130, %v129
    %v193 = vpack.c.bf16 %v132, %v131
    %v194 = vpack.c.bf16 %v134, %v133
    %v195 = vpack.c.bf16 %v136, %v135
    %v196 = vpack.c.bf16 %v138, %v137
    %v197 = vpack.c.bf16 %v140, %v139
    %v198 = vpack.c.bf16 %v142, %v141
    %v199 = vpack.c.bf16 %v144, %v143
    %v200 = vpack.c.bf16 %v146, %v145
    %v201 = vpack.c.bf16 %v148, %v147
    %v202 = vpack.c.bf16 %v150, %v149
    %v203 = vpack.c.bf16 %v152, %v151
    %v204 = vpack.c.bf16 %v154, %v153
    %v205 = vpack.c.bf16 %v156, %v155
    %v206 = vpack.c.bf16 %v158, %v157
    %207 = vmatprep.subr.bf16.mxu0 0
    %208 = vmatpush1.bf16.msra.mxu0 %v159
    %209 = vmatprep.subr.bf16.mxu0 0
    %210 = vmatpush1.bf16.msra.mxu0 %v160
    %211 = vmatprep.subr.bf16.mxu0 0
    %212 = vmatpush1.bf16.msra.mxu0 %v161
    %213 = vmatprep.subr.bf16.mxu0 0
    %214 = vmatpush1.bf16.msra.mxu0 %v162
    %215 = vmatprep.subr.bf16.mxu0 0
    %216 = vmatpush1.bf16.msra.mxu0 %v163
    %217 = vmatprep.subr.bf16.mxu0 0
    %218 = vmatpush1.bf16.msra.mxu0 %v164
    %219 = vmatprep.subr.bf16.mxu0 0
    %220 = vmatpush1.bf16.msra.mxu0 %v165
    %221 = vmatprep.subr.bf16.mxu0 0
    %222 = vmatpush1.bf16.msra.mxu0 %v166
    %223 = vmatprep.subr.bf16.mxu0 0
    %224 = vmatpush1.bf16.msra.mxu0 %v167
    %225 = vmatprep.subr.bf16.mxu0 0
    %226 = vmatpush1.bf16.msra.mxu0 %v168
    %227 = vmatprep.subr.bf16.mxu0 0
    %228 = vmatpush1.bf16.msra.mxu0 %v169
    %229 = vmatprep.subr.bf16.mxu0 0
    %230 = vmatpush1.bf16.msra.mxu0 %v170
    %231 = vmatprep.subr.bf16.mxu0 0
    %232 = vmatpush1.bf16.msra.mxu0 %v171
    %233 = vmatprep.subr.bf16.mxu0 0
    %234 = vmatpush1.bf16.msra.mxu0 %v172
    %235 = vmatprep.subr.bf16.mxu0 0
    %236 = vmatpush1.bf16.msra.mxu0 %v173
    %237 = vmatprep.subr.bf16.mxu0 0
    %238 = vmatpush1.bf16.msra.mxu0 %v174
    %239 = vmatprep.mubr.bf16.mxu0 %v58
    %240 = vmatmul.mubr.bf16.gmra.mrb[0].mxu0 %v57
    %v241 = vpop.f32.mrb[0].mxu0
    %v242 = vadd.f32 0.0, %v241
    %v243 = vpop.f32.mrb[0].mxu0
    %v244 = vpop.f32.mrb[0].mxu0
    %v245 = vadd.f32 0.0, %v244
    %v246 = vpop.f32.mrb[0].mxu0
    %247 = vdwg.mxu0
    %248 = vmatprep.subr.bf16.mxu0 0
    %249 = vmatpush1.bf16.msra.mxu0 %v175
    %250 = vmatprep.subr.bf16.mxu0 0
    %251 = vmatpush1.bf16.msra.mxu0 %v176
    %252 = vmatprep.subr.bf16.mxu0 0
    %253 = vmatpush1.bf16.msra.mxu0 %v177
    %254 = vmatprep.subr.bf16.mxu0 0
    %255 = vmatpush1.bf16.msra.mxu0 %v178
    %256 = vmatprep.subr.bf16.mxu0 0
    %257 = vmatpush1.bf16.msra.mxu0 %v179
    %258 = vmatprep.subr.bf16.mxu0 0
    %259 = vmatpush1.bf16.msra.mxu0 %v180
    %260 = vmatprep.subr.bf16.mxu0 0
    %261 = vmatpush1.bf16.msra.mxu0 %v181
    %262 = vmatprep.subr.bf16.mxu0 0
    %263 = vmatpush1.bf16.msra.mxu0 %v182
    %264 = vmatprep.subr.bf16.mxu0 0
    %265 = vmatpush1.bf16.msra.mxu0 %v183
    %266 = vmatprep.subr.bf16.mxu0 0
    %267 = vmatpush1.bf16.msra.mxu0 %v184
    %268 = vmatprep.subr.bf16.mxu0 0
    %269 = vmatpush1.bf16.msra.mxu0 %v185
    %270 = vmatprep.subr.bf16.mxu0 0
    %271 = vmatpush1.bf16.msra.mxu0 %v186
    %272 = vmatprep.subr.bf16.mxu0 0
    %273 = vmatpush1.bf16.msra.mxu0 %v187
    %274 = vmatprep.subr.bf16.mxu0 0
    %275 = vmatpush1.bf16.msra.mxu0 %v188
    %276 = vmatprep.subr.bf16.mxu0 0
    %277 = vmatpush1.bf16.msra.mxu0 %v189
    %278 = vmatprep.subr.bf16.mxu0 0
    %279 = vmatpush1.bf16.msra.mxu0 %v190
    %280 = vmatprep.mubr.bf16.mxu0 %v60
    %281 = vmatmul.mubr.bf16.gmra.mrb[0].mxu0 %v59
    %v282 = vpop.f32.mrb[0].mxu0
    %v283 = vadd.f32 %v242, %v282
    %v284 = vpop.f32.mrb[0].mxu0
    %v285 = vpop.f32.mrb[0].mxu0
    %v286 = vadd.f32 %v245, %v285
    %v287 = vpop.f32.mrb[0].mxu0
    %288 = vdwg.mxu0
    %289 = vmatprep.subr.bf16.mxu0 0
    %290 = vmatpush1.bf16.msra.mxu0 %v191
    %291 = vmatprep.subr.bf16.mxu0 0
    %292 = vmatpush1.bf16.msra.mxu0 %v192
    %293 = vmatprep.subr.bf16.mxu0 0
    %294 = vmatpush1.bf16.msra.mxu0 %v193
    %295 = vmatprep.subr.bf16.mxu0 0
    %296 = vmatpush1.bf16.msra.mxu0 %v194
    %297 = vmatprep.subr.bf16.mxu0 0
    %298 = vmatpush1.bf16.msra.mxu0 %v195
    %299 = vmatprep.subr.bf16.mxu0 0
    %300 = vmatpush1.bf16.msra.mxu0 %v196
    %301 = vmatprep.subr.bf16.mxu0 0
    %302 = vmatpush1.bf16.msra.mxu0 %v197
    %303 = vmatprep.subr.bf16.mxu0 0
    %304 = vmatpush1.bf16.msra.mxu0 %v198
    %305 = vmatprep.subr.bf16.mxu0 0
    %306 = vmatpush1.bf16.msra.mxu0 %v199
    %307 = vmatprep.subr.bf16.mxu0 0
    %308 = vmatpush1.bf16.msra.mxu0 %v200
    %309 = vmatprep.subr.bf16.mxu0 0
    %310 = vmatpush1.bf16.msra.mxu0 %v201
    %311 = vmatprep.subr.bf16.mxu0 0
    %312 = vmatpush1.bf16.msra.mxu0 %v202
    %313 = vmatprep.subr.bf16.mxu0 0
    %314 = vmatpush1.bf16.msra.mxu0 %v203
    %315 = vmatprep.subr.bf16.mxu0 0
    %316 = vmatpush1.bf16.msra.mxu0 %v204
    %317 = vmatprep.subr.bf16.mxu0 0
    %318 = vmatpush1.bf16.msra.mxu0 %v205
    %319 = vmatprep.subr.bf16.mxu0 0
    %320 = vmatpush1.bf16.msra.mxu0 %v206
    %321 = vmatprep.mubr.bf16.mxu0 %v62
    %322 = vmatmul.mubr.bf16.gmra.mrb[0].mxu0 %v61
    %v323 = vpop.f32.mrb[0].mxu0
    %v324 = vadd.f32 %v283, %v323
    %v325 = vpop.f32.mrb[0].mxu0
    %v326 = vpop.f32.mrb[0].mxu0
    %v327 = vadd.f32 %v286, %v326
    %v328 = vpop.f32.mrb[0].mxu0
    %329 = vdwg.mxu0
    %v330 = vld [vmem:[%s3] sm:$0xff]
    %v331 = vld [vmem:[%s3 + $0x8] sm:$0xff]
    %v332 = vld [vmem:[%s3 + $0x10] sm:$0xff]
    %v333 = vld [vmem:[%s3 + $0x18] sm:$0xff]
    %v334 = vld [vmem:[%s3 + $0x20] sm:$0xff]
    %v335 = vld [vmem:[%s3 + $0x28] sm:$0xff]
    %v336 = vld [vmem:[%s3 + $0x30] sm:$0xff]
    %v337 = vld [vmem:[%s3 + $0x38] sm:$0xff]
    %v338 = vld [vmem:[%s3 + $0x40] sm:$0xff]
    %v339 = vld [vmem:[%s3 + $0x48] sm:$0xff]
    %v340 = vld [vmem:[%s3 + $0x50] sm:$0xff]
    %v341 = vld [vmem:[%s3 + $0x58] sm:$0xff]
    %v342 = vld [vmem:[%s3 + $0x60] sm:$0xff]
    %v343 = vld [vmem:[%s3 + $0x68] sm:$0xff]
    %v344 = vld [vmem:[%s3 + $0x70] sm:$0xff]
    %v345 = vld [vmem:[%s3 + $0x78] sm:$0xff]
    %v346 = vld [vmem:[%s1] sm:$0xff]
    %v347 = vld [vmem:[%s1 + $0x8] sm:$0xff]
    %v348 = vld [vmem:[%s4] sm:$0xff]
    %v349 = vld [vmem:[%s4 + $0x8] sm:$0xff]
    %v350 = vld [vmem:[%s4 + $0x10] sm:$0x7]
    %vm351 = vcmask 154624
    %v353 = vsel %vm351, %v346, 0
    %v356 = vsel %vm351, %v347, 0
    %vm358 = vcmask 1042432
    %v360 = vsel %vm358, %v350, 0
    %362 = vmatprep.subr.mxu0 0.0
    %363 = vmatpush1.msra.mxu0 %v348
    %364 = vmatprep.subr.mxu0 0.0
    %365 = vmatpush1.msra.mxu0 %v349
    %366 = vmatprep.subr.mxu0 0.0
    %367 = vmatpush1.msra.mxu0 %v360
    %368 = vmatprep.subr.mxu0 0.0
    %369 = vmatpush1.msra.mxu0 0.0
    %370 = vmatprep.subr.mxu0 0.0
    %371 = vmatpush1.msra.mxu0 0.0
    %372 = vmatprep.subr.mxu0 0.0
    %373 = vmatpush1.msra.mxu0 0.0
    %374 = vmatprep.subr.mxu0 0.0
    %375 = vmatpush1.msra.mxu0 0.0
    %376 = vmatprep.subr.mxu0 0.0
    %377 = vmatpush1.msra.mxu0 0.0
    %378 = vmatprep.subr.mxu0 0.0
    %379 = vmatpush1.msra.mxu0 0.0
    %380 = vmatprep.subr.mxu0 0.0
    %381 = vmatpush1.msra.mxu0 0.0
    %382 = vmatprep.subr.mxu0 0.0
    %383 = vmatpush1.msra.mxu0 0.0
    %384 = vmatprep.subr.mxu0 0.0
    %385 = vmatpush1.msra.mxu0 0.0
    %386 = vmatprep.subr.mxu0 0.0
    %387 = vmatpush1.msra.mxu0 0.0
    %388 = vmatprep.subr.mxu0 0.0
    %389 = vmatpush1.msra.mxu0 0.0
    %390 = vmatprep.subr.mxu0 0.0
    %391 = vmatpush1.msra.mxu0 0.0
    %392 = vmatprep.subr.mxu0 0.0
    %393 = vmatpush1.msra.mxu0 0.0
    %394 = vmatprep.subr.mxu0 0.0
    %395 = vmatpush1.msra.mxu0 0.0
    %396 = vmatprep.subr.mxu0 0.0
    %397 = vmatpush1.msra.mxu0 0.0
    %398 = vmatprep.subr.mxu0 0.0
    %399 = vmatpush1.msra.mxu0 0.0
    %400 = vmatprep.subr.mxu0 0.0
    %401 = vmatpush1.msra.mxu0 0.0
    %402 = vmatprep.subr.mxu0 0.0
    %403 = vmatpush1.msra.mxu0 0.0
    %404 = vmatprep.subr.mxu0 0.0
    %405 = vmatpush1.msra.mxu0 0.0
    %406 = vmatprep.subr.mxu0 0.0
    %407 = vmatpush1.msra.mxu0 0.0
    %408 = vmatprep.subr.mxu0 0.0
    %409 = vmatpush1.msra.mxu0 0.0
    %410 = vmatprep.subr.mxu0 0.0
    %411 = vmatpush1.msra.mxu0 0.0
    %412 = vmatprep.subr.mxu0 0.0
    %413 = vmatpush1.msra.mxu0 0.0
    %414 = vmatprep.subr.mxu0 0.0
    %415 = vmatpush1.msra.mxu0 0.0
    %416 = vmatprep.subr.mxu0 0.0
    %417 = vmatpush1.msra.mxu0 0.0
    %418 = vmatprep.subr.mxu0 0.0
    %419 = vmatpush1.msra.mxu0 0.0
    %420 = vmatprep.subr.mxu0 0.0
    %421 = vmatpush1.msra.mxu0 0.0
    %422 = vmatprep.subr.mxu0 0.0
    %423 = vmatpush1.msra.mxu0 0.0
    %424 = vmatprep.subr.mxu0 0.0
    %425 = vmatpush1.msra.mxu0 0.0
    %426 = vmatprep.mubr.f32.mxu0 0.0
    %427 = vmatmul.mubr.f32.gmra.mrb[0].mxu0 %v353
    %v428 = vpop.f32.mrb[0].mxu0
    %v429 = vadd.f32 0.0, %v428
    %v430 = vpop.f32.mrb[0].mxu0
    %431 = vmatprep.mubr.f32.mxu0 0.0
    %432 = vmatmul.mubr.f32.gmra.mrb[0].mxu0 %v356
    %v433 = vpop.f32.mrb[0].mxu0
    %v434 = vadd.f32 0.0, %v433
    %v435 = vpop.f32.mrb[0].mxu0
    %436 = vdwg.mxu0
    %437 = vmatprep.subr.mxu0 0.0
    %438 = vmatpush1.msra.mxu0 %v330
    %439 = vmatprep.subr.mxu0 0.0
    %440 = vmatpush1.msra.mxu0 %v331
    %441 = vmatprep.subr.mxu0 0.0
    %442 = vmatpush1.msra.mxu0 %v332
    %443 = vmatprep.subr.mxu0 0.0
    %444 = vmatpush1.msra.mxu0 %v333
    %445 = vmatprep.subr.mxu0 0.0
    %446 = vmatpush1.msra.mxu0 %v334
    %447 = vmatprep.subr.mxu0 0.0
    %448 = vmatpush1.msra.mxu0 %v335
    %449 = vmatprep.subr.mxu0 0.0
    %450 = vmatpush1.msra.mxu0 %v336
    %451 = vmatprep.subr.mxu0 0.0
    %452 = vmatpush1.msra.mxu0 %v337
    %453 = vmatprep.subr.mxu0 0.0
    %454 = vmatpush1.msra.mxu0 %v338
    %455 = vmatprep.subr.mxu0 0.0
    %456 = vmatpush1.msra.mxu0 %v339
    %457 = vmatprep.subr.mxu0 0.0
    %458 = vmatpush1.msra.mxu0 %v340
    %459 = vmatprep.subr.mxu0 0.0
    %460 = vmatpush1.msra.mxu0 %v341
    %461 = vmatprep.subr.mxu0 0.0
    %462 = vmatpush1.msra.mxu0 %v342
    %463 = vmatprep.subr.mxu0 0.0
    %464 = vmatpush1.msra.mxu0 %v343
    %465 = vmatprep.subr.mxu0 0.0
    %466 = vmatpush1.msra.mxu0 %v344
    %467 = vmatprep.subr.mxu0 0.0
    %468 = vmatpush1.msra.mxu0 %v345
    %469 = vmatprep.subr.mxu0 0.0
    %470 = vmatpush1.msra.mxu0 0.0
    %471 = vmatprep.subr.mxu0 0.0
    %472 = vmatpush1.msra.mxu0 0.0
    %473 = vmatprep.subr.mxu0 0.0
    %474 = vmatpush1.msra.mxu0 0.0
    %475 = vmatprep.subr.mxu0 0.0
    %476 = vmatpush1.msra.mxu0 0.0
    %477 = vmatprep.subr.mxu0 0.0
    %478 = vmatpush1.msra.mxu0 0.0
    %479 = vmatprep.subr.mxu0 0.0
    %480 = vmatpush1.msra.mxu0 0.0
    %481 = vmatprep.subr.mxu0 0.0
    %482 = vmatpush1.msra.mxu0 0.0
    %483 = vmatprep.subr.mxu0 0.0
    %484 = vmatpush1.msra.mxu0 0.0
    %485 = vmatprep.subr.mxu0 0.0
    %486 = vmatpush1.msra.mxu0 0.0
    %487 = vmatprep.subr.mxu0 0.0
    %488 = vmatpush1.msra.mxu0 0.0
    %489 = vmatprep.subr.mxu0 0.0
    %490 = vmatpush1.msra.mxu0 0.0
    %491 = vmatprep.subr.mxu0 0.0
    %492 = vmatpush1.msra.mxu0 0.0
    %493 = vmatprep.subr.mxu0 0.0
    %494 = vmatpush1.msra.mxu0 0.0
    %495 = vmatprep.subr.mxu0 0.0
    %496 = vmatpush1.msra.mxu0 0.0
    %497 = vmatprep.subr.mxu0 0.0
    %498 = vmatpush1.msra.mxu0 0.0
    %499 = vmatprep.subr.mxu0 0.0
    %500 = vmatpush1.msra.mxu0 0.0
    %501 = vmatprep.mubr.f32.mxu0 0.0
    %502 = vmatmul.mubr.f32.gmra.mrb[0].mxu0 %v324
    %v503 = vpop.f32.mrb[0].mxu0
    %v504 = vadd.f32 %v429, %v503
    %v505 = vpop.f32.mrb[0].mxu0
    %506 = vmatprep.mubr.f32.mxu0 0.0
    %507 = vmatmul.mubr.f32.gmra.mrb[0].mxu0 %v327
    %v508 = vpop.f32.mrb[0].mxu0
    %v509 = vadd.f32 %v434, %v508
    %v510 = vpop.f32.mrb[0].mxu0
    %511 = vdwg.mxu0
    %v512 = vld [vmem:[%s5] sm:$0x1]
    %v514 = vlaneseq
    %v515 = vshrl.u32 %v514, 7
    %v516 = vsub.s32 0, %v515
    %v517 = vrot.slane %v512, %v516
    %v519 = vadd.f32 %v504, %v517
    %v520 = vadd.f32 %v509, %v517
    %v521 = vmax.f32 %v519, 0.0
    %v522 = vmax.f32 %v520, 0.0
    %v523 = vld [vmem:[%s6] sm:$0xff]
    %v524 = vld [vmem:[%s6 + $0x8] sm:$0xff]
    %v525 = vld [vmem:[%s6 + $0x10] sm:$0xff]
    %v526 = vld [vmem:[%s6 + $0x18] sm:$0xff]
    %v527 = vld [vmem:[%s6 + $0x20] sm:$0xff]
    %v528 = vld [vmem:[%s6 + $0x28] sm:$0xff]
    %v529 = vld [vmem:[%s6 + $0x30] sm:$0xff]
    %v530 = vld [vmem:[%s6 + $0x38] sm:$0xff]
    %v531 = vld [vmem:[%s7] sm:$0x1]
    %v533 = vlaneseq
    %v534 = vshrl.u32 %v533, 7
    %v535 = vsub.s32 0, %v534
    %v536 = vrot.slane %v531, %v535
    %vm538 = vcmask 523264
    %v540 = vsel %vm538, %v521, 0
    %v543 = vsel %vm538, %v522, 0
    %545 = vmatprep.subr.mxu0 0.0
    %546 = vmatpush1.msra.mxu0 %v523
    %547 = vmatprep.subr.mxu0 0.0
    %548 = vmatpush1.msra.mxu0 %v524
    %549 = vmatprep.subr.mxu0 0.0
    %550 = vmatpush1.msra.mxu0 %v525
    %551 = vmatprep.subr.mxu0 0.0
    %552 = vmatpush1.msra.mxu0 %v526
    %553 = vmatprep.subr.mxu0 0.0
    %554 = vmatpush1.msra.mxu0 %v527
    %555 = vmatprep.subr.mxu0 0.0
    %556 = vmatpush1.msra.mxu0 %v528
    %557 = vmatprep.subr.mxu0 0.0
    %558 = vmatpush1.msra.mxu0 %v529
    %559 = vmatprep.subr.mxu0 0.0
    %560 = vmatpush1.msra.mxu0 %v530
    %561 = vmatprep.subr.mxu0 0.0
    %562 = vmatpush1.msra.mxu0 0.0
    %563 = vmatprep.subr.mxu0 0.0
    %564 = vmatpush1.msra.mxu0 0.0
    %565 = vmatprep.subr.mxu0 0.0
    %566 = vmatpush1.msra.mxu0 0.0
    %567 = vmatprep.subr.mxu0 0.0
    %568 = vmatpush1.msra.mxu0 0.0
    %569 = vmatprep.subr.mxu0 0.0
    %570 = vmatpush1.msra.mxu0 0.0
    %571 = vmatprep.subr.mxu0 0.0
    %572 = vmatpush1.msra.mxu0 0.0
    %573 = vmatprep.subr.mxu0 0.0
    %574 = vmatpush1.msra.mxu0 0.0
    %575 = vmatprep.subr.mxu0 0.0
    %576 = vmatpush1.msra.mxu0 0.0
    %577 = vmatprep.subr.mxu0 0.0
    %578 = vmatpush1.msra.mxu0 0.0
    %579 = vmatprep.subr.mxu0 0.0
    %580 = vmatpush1.msra.mxu0 0.0
    %581 = vmatprep.subr.mxu0 0.0
    %582 = vmatpush1.msra.mxu0 0.0
    %583 = vmatprep.subr.mxu0 0.0
    %584 = vmatpush1.msra.mxu0 0.0
    %585 = vmatprep.subr.mxu0 0.0
    %586 = vmatpush1.msra.mxu0 0.0
    %587 = vmatprep.subr.mxu0 0.0
    %588 = vmatpush1.msra.mxu0 0.0
    %589 = vmatprep.subr.mxu0 0.0
    %590 = vmatpush1.msra.mxu0 0.0
    %591 = vmatprep.subr.mxu0 0.0
    %592 = vmatpush1.msra.mxu0 0.0
    %593 = vmatprep.subr.mxu0 0.0
    %594 = vmatpush1.msra.mxu0 0.0
    %595 = vmatprep.subr.mxu0 0.0
    %596 = vmatpush1.msra.mxu0 0.0
    %597 = vmatprep.subr.mxu0 0.0
    %598 = vmatpush1.msra.mxu0 0.0
    %599 = vmatprep.subr.mxu0 0.0
    %600 = vmatpush1.msra.mxu0 0.0
    %601 = vmatprep.subr.mxu0 0.0
    %602 = vmatpush1.msra.mxu0 0.0
    %603 = vmatprep.subr.mxu0 0.0
    %604 = vmatpush1.msra.mxu0 0.0
    %605 = vmatprep.subr.mxu0 0.0
    %606 = vmatpush1.msra.mxu0 0.0
    %607 = vmatprep.subr.mxu0 0.0
    %608 = vmatpush1.msra.mxu0 0.0
    %609 = vmatprep.mubr.f32.mxu0 0.0
    %610 = vmatmul.mubr.f32.gmra.mrb[0].mxu0 %v540
    %v611 = vpop.f32.mrb[0].mxu0
    %v612 = vadd.f32 %v536, %v611
    %v613 = vpop.f32.mrb[0].mxu0
    %614 = vmatprep.mubr.f32.mxu0 0.0
    %615 = vmatmul.mubr.f32.gmra.mrb[0].mxu0 %v543
    %v616 = vpop.f32.mrb[0].mxu0
    %v617 = vadd.f32 %v536, %v616
    %v618 = vpop.f32.mrb[0].mxu0
    %619 = vdwg.mxu0
    %v620 = vmax.f32 %v612, 0.0
    %v621 = vmax.f32 %v617, 0.0
    %vm622 = vcmask 261120
    %623 = vst.msk [vmem:[#allocation5] sm:$0xff] %vm622, %v620
    %624 = vst.msk [vmem:[#allocation5 + $0x8] sm:$0xff] %vm622, %v621
    // Predicated region
    $region38: #{location_model_pallas.1} parent=1 // pred_check
      _
    $region39: #{location_model_pallas.1} parent=1 // pred_check_branch
      %626 = sbr.rel (0) target = $region41
    $region40: #{location_model_pallas.1} parent=1 // pred_region
      %s628 = ssub.s32 256, 256
      %629 = vsyncadd [#allocation4], %s628
      %s630 = sshll.u32 [#allocation5], 4
      %s631 = int_to_ptr.vmem [resolvable:$true] %s630
      %636 = dma.vmem_to_hbm [thread:$0]  %s631, 256, %s8, [#allocation4], 128, 128, 8
    $region41: #{location_model_pallas.1} parent=1 // pred_fallthru
      _
    // Predicated region
    $region42: #{location_model_pallas.1} parent=1 // pred_check
      _
    $region43: #{location_model_pallas.1} parent=1 // pred_check_branch
      %638 = sbr.rel (0) target = $region45
    $region44: #{location_model_pallas.1} parent=1 // pred_region
      %639 = dma.done [#allocation4], 256
    $region45: #{location_model_pallas.1} parent=1 // pred_fallthru
      _
    %640 = vsyncpa [#allocation3], 1
    %641 = vsyncpa [#allocation4], 1

</llo_original>
